<compile_context>
chip_gen: v6e
topology: v6e:2x2x1
jax: 0.10.0
libtpu: 0.0.40
codegen_flags: <defaults>
</compile_context>

<pallas_src>
import jax
import jax.numpy as jnp
from jax.experimental import pallas as pl
from jax.experimental.pallas import tpu as pltpu

_EPS = 1e-12  # F.normalize default eps


def _embedder_kernel(nst_ref, hidden_ref, mask_ref, out_ref, acc_ref, cnt_ref):
    # nst_ref:    (NB,) i32 in SMEM  -- non-empty seq tiles per batch tile
    # hidden_ref: (TB, TS, H)        -- f32 or bf16 tile
    # mask_ref:   (TB, TS) i32
    # out_ref:    (TB, H)  f32
    # acc_ref:    (TB, H)  f32 scratch (masked sum)
    # cnt_ref:    (TB, 1)  f32 scratch (token count)
    b = pl.program_id(0)
    s = pl.program_id(1)

    @pl.when(s == 0)
    def _init():
        acc_ref[...] = jnp.zeros_like(acc_ref)
        cnt_ref[...] = jnp.zeros_like(cnt_ref)

    # Accumulate only on seq tiles that contain at least one valid token for
    # some row of this batch tile.  Fully-padded tiles are never DMA'd (their
    # block index is clamped in the index_map); this guard also prevents
    # double-counting the re-presented clamped block.
    @pl.when(s < nst_ref[b])
    def _accumulate():
        m = mask_ref[...].astype(jnp.float32)               # (TB, TS)
        h = hidden_ref[...].astype(jnp.float32)             # (TB, TS, H)
        acc_ref[...] += jnp.sum(h * m[..., None], axis=1)   # (TB, H)
        cnt_ref[...] += jnp.sum(m, axis=1, keepdims=True)   # (TB, 1)

    @pl.when(s == pl.num_programs(1) - 1)
    def _finalize():
        summed = acc_ref[...]                                # (TB, H)
        counts = cnt_ref[...]                                # (TB, 1)
        # pooled = summed / counts ; F.normalize -> pooled / max(||pooled||, eps)
        #        = summed / max(||summed||, eps * counts)
        # rsqrt(max(x, c^2)) == 1 / max(sqrt(x), c)  (c >= 0), runs on the EUP.
        sumsq = jnp.sum(summed * summed, axis=1, keepdims=True)
        clamp = jnp.float32(_EPS) * counts
        inv_norm = jax.lax.rsqrt(jnp.maximum(sumsq, clamp * clamp))
        out_ref[...] = (summed * inv_norm).astype(out_ref.dtype)


def embedder_forward(last_hidden_states, attention_mask, *, seq_tile=None,
                     max_tile_bytes=8 * 1024 * 1024):
    """average_pool + L2 normalize.

    last_hidden_states: (B, S, H) float32 or bfloat16
    attention_mask:     (B, S)    int32   (1 = valid token, 0 = pad)
    returns:            (B, H)    float32 unit-norm embeddings
    """
    B, S, H = last_hidden_states.shape
    assert attention_mask.shape == (B, S)
    itemsize = jnp.dtype(last_hidden_states.dtype).itemsize

    # Batch tile: 8 rows when possible (sublane-friendly mask block), else the
    # full batch (block dim == array dim is always legal).
    TB = 8 if B % 8 == 0 else B

    # Sequence tile: largest power-of-two multiple of 128 dividing S whose
    # double-buffered hidden tile stays under the VMEM budget (sized to be
    # safe on v7x's smaller VMEM and v5e's 16 MiB default scoped limit);
    # otherwise the full S.
    if seq_tile is not None:
        TS = seq_tile
    elif S % 128 == 0:
        TS = 128
        while S % (TS * 2) == 0 and 2 * TB * (TS * 2) * H * itemsize <= max_tile_bytes:
            TS *= 2
    else:
        TS = S
    assert S % TS == 0 and (TS == S or TS % 128 == 0), "bad sequence tile"
    NB, NS = B // TB, S // TS

    # Scalar-prefetched count of non-empty sequence tiles per batch tile, so
    # fully-padded tiles are neither fetched from HBM nor processed.
    pos = jnp.arange(S, dtype=jnp.int32)
    last_valid = jnp.max(jnp.where(attention_mask > 0, pos, -1), axis=1)  # (B,)
    tiles_per_row = (last_valid // TS) + 1                                # 0 if empty
    nst = jnp.max(tiles_per_row.reshape(NB, TB), axis=1).astype(jnp.int32)

    def _seq_block(s, nst_ref, b):
        # Clamp past-the-end tiles to the last useful tile: unchanged block
        # index between consecutive grid steps => no extra DMA.
        return jnp.minimum(s, jnp.maximum(nst_ref[b] - 1, 0))

    hidden_spec = pl.BlockSpec(
        (TB, TS, H), lambda b, s, nst: (b, _seq_block(s, nst, b), 0))
    mask_spec = pl.BlockSpec(
        (TB, TS), lambda b, s, nst: (b, _seq_block(s, nst, b)))
    out_spec = pl.BlockSpec((TB, H), lambda b, s, nst: (b, 0))

    grid_spec = pltpu.PrefetchScalarGridSpec(
        num_scalar_prefetch=1,
        grid=(NB, NS),
        in_specs=[hidden_spec, mask_spec],
        out_specs=out_spec,
        scratch_shapes=[pltpu.VMEM((TB, H), jnp.float32),
                        pltpu.VMEM((TB, 1), jnp.float32)],
    )

    return pl.pallas_call(
        _embedder_kernel,
        out_shape=jax.ShapeDtypeStruct((B, H), jnp.float32),
        grid_spec=grid_spec,
        compiler_params=pltpu.CompilerParams(
            # Batch tiles are independent -> shard across v7x's 2 TensorCores;
            # the sequence axis carries the accumulator -> arbitrary.
            dimension_semantics=("parallel", "arbitrary"),
            vmem_limit_bytes=32 * 1024 * 1024,
        ),
    )(nst, last_hidden_states, attention_mask)


def embedder_reference(last_hidden_states, attention_mask):
    m = attention_mask.astype(jnp.float32)
    pooled = (last_hidden_states * m[..., None]).sum(axis=1) / m.sum(
        axis=1, keepdims=True)
    norm = jnp.sqrt(jnp.sum(pooled * pooled, axis=1, keepdims=True))
    return pooled / jnp.maximum(norm, _EPS)


if __name__ == "__main__":
    # TODO(synk): the HuggingFace AutoModel backbone has no Pallas equivalent;
    # its `last_hidden_state` output is synthesized as a random input here.
    B, S, H = 4, 256, 128
    key = jax.random.PRNGKey(0)
    k1, k2 = jax.random.split(key)

    def make_mask(lengths):
        return (jnp.arange(S, dtype=jnp.int32)[None, :]
                < jnp.asarray(lengths, jnp.int32)[:, None]).astype(jnp.int32)

    # --- f32 input, heavy padding: exercises the padded-tile skip path. ---
    hidden_f32 = jax.random.normal(k1, (B, S, H), dtype=jnp.float32)
    mask_a = make_mask([100, 120, 64, 1])
    out_a = jax.block_until_ready(
        embedder_forward(hidden_f32, mask_a, seq_tile=128))
    ref_a = embedder_reference(hidden_f32, mask_a)
    assert out_a.shape == (B, H)
    assert jnp.allclose(out_a, ref_a, atol=1e-5, rtol=1e-5), "f32 mismatch"
    assert jnp.allclose(jnp.linalg.norm(out_a, axis=1), jnp.ones((B,)),
                        atol=1e-5), "not unit-norm"

    # --- bf16 input (what a real backbone emits): f32 accumulation in-kernel,
    #     all sequence tiles active. ---
    hidden_bf16 = jax.random.normal(k2, (B, S, H),
                                    dtype=jnp.float32).astype(jnp.bfloat16)
    mask_b = make_mask([256, 200, 8, 130])
    out_b = jax.block_until_ready(
        embedder_forward(hidden_bf16, mask_b, seq_tile=128))
    ref_b = embedder_reference(hidden_bf16.astype(jnp.float32), mask_b)
    assert jnp.allclose(out_b, ref_b, atol=1e-3, rtol=1e-3), "bf16 mismatch"

    print("KERNEL_OK")
</pallas_src>

<mosaic_0001>
module attributes {stable_mosaic.version = 11 : i64} {
  func.func @_embedder_kernel(%arg0: i32, %arg1: i32, %arg2: memref<1xi32, #tpu.memory_space<smem>>, %arg3: memref<4x128x128xf32, #tpu.memory_space<vmem>>, %arg4: memref<4x128xi32, #tpu.memory_space<vmem>>, %arg5: memref<4x128xf32, #tpu.memory_space<vmem>>, %arg6: memref<4x128xf32, #tpu.memory_space<vmem>>, %arg7: memref<4x1xf32, #tpu.memory_space<vmem>>) attributes {dimension_semantics = [#tpu.dimension_semantics<parallel>, #tpu.dimension_semantics<arbitrary>], iteration_bounds = array<i64: 1, 2>, scalar_prefetch = 1 : i64, scratch_operands = 2 : i64, tpu.core_type = #tpu.core_type<tc>, window_params = [{transform_indices = @transform_0, window_bounds = array<i64: 4, 128, 128>}, {transform_indices = @transform_1, window_bounds = array<i64: 4, 128>}, {transform_indices = @transform_2, window_bounds = array<i64: 4, 128>}]} {
    %c0_i32 = arith.constant 0 : i32
    %0 = arith.cmpi eq, %arg1, %c0_i32 : i32
    %1 = arith.extui %0 : i1 to i32
    %c0_i32_0 = arith.constant 0 : i32
    %2 = arith.cmpi ne, %1, %c0_i32_0 : i32
    scf.if %2 {
      %cst = arith.constant 0.000000e+00 : f32
      %11 = vector.broadcast %cst : f32 to vector<4x128xf32>
      %c0 = arith.constant 0 : index
      %c0_3 = arith.constant 0 : index
      %12 = vector.load %arg6[%c0, %c0_3] : memref<4x128xf32, #tpu.memory_space<vmem>>, vector<4x128xf32>
      tpu.vector_store %arg6[%c0, %c0_3], %11 {strides = array<i32>} : memref<4x128xf32, #tpu.memory_space<vmem>>, vector<4x128xf32>,
      %cst_4 = arith.constant 0.000000e+00 : f32
      %13 = vector.broadcast %cst_4 : f32 to vector<4x1xf32>
      %c0_5 = arith.constant 0 : index
      %c0_6 = arith.constant 0 : index
      %14 = vector.load %arg7[%c0_5, %c0_6] : memref<4x1xf32, #tpu.memory_space<vmem>>, vector<4x1xf32>
      tpu.vector_store %arg7[%c0_5, %c0_6], %13 {strides = array<i32>} : memref<4x1xf32, #tpu.memory_space<vmem>>, vector<4x1xf32>,
    } else {
    }
    %3 = arith.index_cast %arg0 : i32 to index
    %4 = memref.load %arg2[%3] : memref<1xi32, #tpu.memory_space<smem>>
    %5 = arith.cmpi slt, %arg1, %4 : i32
    %6 = arith.extui %5 : i1 to i32
    %c0_i32_1 = arith.constant 0 : i32
    %7 = arith.cmpi ne, %6, %c0_i32_1 : i32
    scf.if %7 {
      %c0 = arith.constant 0 : index
      %c0_3 = arith.constant 0 : index
      %11 = vector.load %arg4[%c0, %c0_3] : memref<4x128xi32, #tpu.memory_space<vmem>>, vector<4x128xi32>
      %12 = arith.sitofp %11 : vector<4x128xi32> to vector<4x128xf32>
      %c0_4 = arith.constant 0 : index
      %c0_5 = arith.constant 0 : index
      %c0_6 = arith.constant 0 : index
      %13 = vector.load %arg3[%c0_4, %c0_5, %c0_6] : memref<4x128x128xf32, #tpu.memory_space<vmem>>, vector<4x128x128xf32>
      %c0_7 = arith.constant 0 : index
      %c0_8 = arith.constant 0 : index
      %14 = vector.load %arg6[%c0_7, %c0_8] : memref<4x128xf32, #tpu.memory_space<vmem>>, vector<4x128xf32>
      %15 = vector.shape_cast %12 : vector<4x128xf32> to vector<4x128x1xf32>
      %16 = vector.broadcast %15 : vector<4x128x1xf32> to vector<4x128x128xf32>
      %17 = arith.mulf %13, %16 : vector<4x128x128xf32>
      %cst = arith.constant dense<0.000000e+00> : vector<4x128xf32>
      %18 = vector.multi_reduction <add>, %17, %cst [1] : vector<4x128x128xf32> to vector<4x128xf32>
      %19 = arith.addf %14, %18 : vector<4x128xf32>
      %c0_9 = arith.constant 0 : index
      %c0_10 = arith.constant 0 : index
      %20 = vector.load %arg6[%c0_9, %c0_10] : memref<4x128xf32, #tpu.memory_space<vmem>>, vector<4x128xf32>
      tpu.vector_store %arg6[%c0_9, %c0_10], %19 {strides = array<i32>} : memref<4x128xf32, #tpu.memory_space<vmem>>, vector<4x128xf32>,
      %c0_11 = arith.constant 0 : index
      %c0_12 = arith.constant 0 : index
      %21 = vector.load %arg7[%c0_11, %c0_12] : memref<4x1xf32, #tpu.memory_space<vmem>>, vector<4x1xf32>
      %cst_13 = arith.constant dense<0.000000e+00> : vector<4xf32>
      %22 = vector.multi_reduction <add>, %12, %cst_13 [1] : vector<4x128xf32> to vector<4xf32>
      %23 = vector.shape_cast %22 : vector<4xf32> to vector<4x1xf32>
      %24 = arith.addf %21, %23 : vector<4x1xf32>
      %c0_14 = arith.constant 0 : index
      %c0_15 = arith.constant 0 : index
      %25 = vector.load %arg7[%c0_14, %c0_15] : memref<4x1xf32, #tpu.memory_space<vmem>>, vector<4x1xf32>
      tpu.vector_store %arg7[%c0_14, %c0_15], %24 {strides = array<i32>} : memref<4x1xf32, #tpu.memory_space<vmem>>, vector<4x1xf32>,
    } else {
    }
    %c1_i32 = arith.constant 1 : i32
    %8 = arith.cmpi eq, %arg1, %c1_i32 : i32
    %9 = arith.extui %8 : i1 to i32
    %c0_i32_2 = arith.constant 0 : i32
    %10 = arith.cmpi ne, %9, %c0_i32_2 : i32
    scf.if %10 {
      %c0 = arith.constant 0 : index
      %c0_3 = arith.constant 0 : index
      %11 = vector.load %arg6[%c0, %c0_3] : memref<4x128xf32, #tpu.memory_space<vmem>>, vector<4x128xf32>
      %c0_4 = arith.constant 0 : index
      %c0_5 = arith.constant 0 : index
      %12 = vector.load %arg7[%c0_4, %c0_5] : memref<4x1xf32, #tpu.memory_space<vmem>>, vector<4x1xf32>
      %13 = arith.mulf %11, %11 : vector<4x128xf32>
      %cst = arith.constant dense<0.000000e+00> : vector<4xf32>
      %14 = vector.multi_reduction <add>, %13, %cst [1] : vector<4x128xf32> to vector<4xf32>
      %15 = vector.shape_cast %14 : vector<4xf32> to vector<4x1xf32>
      %cst_6 = arith.constant 9.99999996E-13 : f32
      %16 = vector.broadcast %cst_6 : f32 to vector<4x1xf32>
      %17 = arith.mulf %16, %12 : vector<4x1xf32>
      %18 = arith.mulf %17, %17 : vector<4x1xf32>
      %19 = arith.maximumf %15, %18 : vector<4x1xf32>
      %20 = math.rsqrt %19 : vector<4x1xf32>
      %21 = vector.broadcast %20 : vector<4x1xf32> to vector<4x128xf32>
      %22 = arith.mulf %11, %21 : vector<4x128xf32>
      %c0_7 = arith.constant 0 : index
      %c0_8 = arith.constant 0 : index
      %23 = vector.load %arg5[%c0_7, %c0_8] : memref<4x128xf32, #tpu.memory_space<vmem>>, vector<4x128xf32>
      tpu.vector_store %arg5[%c0_7, %c0_8], %22 {strides = array<i32>} : memref<4x128xf32, #tpu.memory_space<vmem>>, vector<4x128xf32>,
    } else {
    }
    return
  }
  func.func @transform_0(%arg0: i32, %arg1: i32, %arg2: memref<1xi32, #tpu.memory_space<smem>>) -> (i32, i32, i32) {
    %0 = arith.index_cast %arg0 : i32 to index
    %1 = memref.load %arg2[%0] : memref<1xi32, #tpu.memory_space<smem>>
    %c1_i32 = arith.constant 1 : i32
    %2 = arith.subi %1, %c1_i32 : i32
    %c0_i32 = arith.constant 0 : i32
    %3 = arith.maxsi %2, %c0_i32 : i32
    %4 = arith.minsi %arg1, %3 : i32
    %c0_i32_0 = arith.constant 0 : i32
    %c0_i32_1 = arith.constant 0 : i32
    return %arg0, %4, %c0_i32_0 : i32, i32, i32
  }
  func.func @transform_1(%arg0: i32, %arg1: i32, %arg2: memref<1xi32, #tpu.memory_space<smem>>) -> (i32, i32) {
    %0 = arith.index_cast %arg0 : i32 to index
    %1 = memref.load %arg2[%0] : memref<1xi32, #tpu.memory_space<smem>>
    %c1_i32 = arith.constant 1 : i32
    %2 = arith.subi %1, %c1_i32 : i32
    %c0_i32 = arith.constant 0 : i32
    %3 = arith.maxsi %2, %c0_i32 : i32
    %4 = arith.minsi %arg1, %3 : i32
    %c0_i32_0 = arith.constant 0 : i32
    return %arg0, %4 : i32, i32
  }
  func.func @transform_2(%arg0: i32, %arg1: i32, %arg2: memref<1xi32, #tpu.memory_space<smem>>) -> (i32, i32) {
    %c0_i32 = arith.constant 0 : i32
    %c0_i32_0 = arith.constant 0 : i32
    return %arg0, %c0_i32 : i32, i32
  }
}

</mosaic_0001>

<llo_original>
// kernel: tpu_custom_call.1
$region0: #{tpu_custom_call.1}
  #allocation0 [shape = 'u32[]', space=smem, size = 0x4, offset = 0x4, fixed_abs, tag = 'smem constant byte address 0x4 - core index']
  #allocation1 [shape = 'u32[144,128]{1,0:T(1,128)}', space=vmem, size = 0x12000, scoped, tag = 'internal scratch']
  #allocation2 [shape = 'f32[4,128]{1,0:T(4,128)}', space=vmem, size = 0x800, scoped, tag = 'scratch operand']
  #allocation3 [shape = 'f32[4,1]{1,0:T(4,128)}', space=vmem, size = 0x800, scoped, tag = 'scratch operand']
  #allocation4 [shape = 's32[1]{0}', space=sflag, size = 0x4, scoped, tag = 'scoped memory for tpu_custom_call.1']
  #allocation5 [shape = 's32[1]{0:T(128)S(6)}', space=smem, size = 0x200, scoped, tag = 'prefetched SMEM operand 0']
  #allocation12 [shape = 's32[]', space=sflag, size = 0x4, offset = 0, fixed_abs, tag = 'sflag constant byte address 0x0 - dummy sync flag']
  %s0 = inlined_call_operand.<no memory space> [shape: s32[1], index: 0, kind: input, shape index: {}]
  %s1 = inlined_call_operand.hbm [shape: f32[4,256,128], index: 1, kind: input, shape index: {}]
  %s2 = inlined_call_operand.hbm [shape: s32[4,256], index: 2, kind: input, shape index: {}]
  %s3 = inlined_call_operand.hbm [shape: f32[4,128], index: 3, kind: output, shape index: {}]
  %s4 = sld [smem:[#allocation0]]
  $region61: #{tpu_custom_call.1} parent=0
    _
  %s6 = ssub.s32 1, %s4
  %s7 = scalar_select 0, %s6, %s4
  %8 = sst [smem:[#allocation5]] %s0
  $region1: #{tpu_custom_call.1} parent=0
    #allocation6 [shape = 'u8[524288]{0}', space=vmem, size = 0x80000, scoped, tag = 'input window, operand 1']
    #allocation7 [shape = 's32[2]{0}', space=sflag, size = 0x8, scoped, tag = 'scoped memory for tpu_custom_call.1']
    #allocation8 [shape = 's32[2]{0}', space=sflag, size = 0x8, scoped, tag = 'scoped memory for tpu_custom_call.1']
    #allocation9 [shape = 'u8[4096]{0}', space=vmem, size = 0x1000, scoped, tag = 'input window, operand 2']
    #allocation10 [shape = 's32[2]{0}', space=sflag, size = 0x8, scoped, tag = 'scoped memory for tpu_custom_call.1']
    #allocation11 [shape = 'u8[2048]{0}', space=vmem, size = 0x800, scoped, tag = 'output window, operand 0, single buffered']
    %9 = vsyncpa [#allocation7], 0
    %s10 = scalar_lea.sflag [#allocation7], 1
    %11 = vsyncpa %s10, 0
    %12 = vsyncpa [#allocation10], 0
    %s13 = scalar_lea.sflag [#allocation10], 1
    %14 = vsyncpa %s13, 0
    %15 = vsyncpa [#allocation8], 0
    loop: start=0, step=1, limit=4
    $region2: #{tpu_custom_call.1} parent=1 // loop_pre_header
      _
    $region3: #{tpu_custom_call.1} parent=1 // loop_header
      %s17 = sphi 0, %s21
      %p18 = scmp.ge.s32.totalorder %s17, 4
      %s24 = sphi 0, %s36
      %s25 = sphi 0, %s32
      %s26 = sphi 0, %s24
      %s27 = sphi 0, %s25
      %s28 = sphi 0, %s26
      %s29 = sphi 0, %s27
      %s53 = sphi 0, %s55
      %s56 = sphi 0, %s53
      %s57 = sphi 0, %s56
      %s73 = sphi 0, %s57
      %s93 = sphi 0, %s95
      %s96 = sphi 0, %s93
      %s97 = sphi 0, %s96
      %s113 = sphi 0, %s97
      %s119 = sphi 0, %s121
      %s122 = sphi 0, %s119
      %s123 = sphi 0, %s122
      %s139 = sphi 0, %s123
    $region4: #{tpu_custom_call.1} parent=1 // loop_header_branch
      %20 = sbr.rel (%p18) target = $region8
    $region5: #{tpu_custom_call.1} parent=1 // loop_body
      %s22 = ssub.s32 %s17, 1
      %s23 = ssub.s32 %s17, 2
      %s30 = sadd.s32 1, %s25
      %p31 = scmp.ge.s32.totalorder %s30, 2
      %s32 = scalar_select %p31, 0, %s30
      %s33 = sadd.s32 1, %s24
      %s34 = scalar_select %p31, %s33, %s24
      %p35 = scmp.ge.s32.totalorder %s34, 1
      %s36 = scalar_select %p35, 0, %s34
      %s37 = sld [smem:[#allocation5 + %s24]]
      %s38 = ssub.s32 %s37, 1
      %p39 = scmp.gt.s32.totalorder %s38, 0
      %s40 = scalar_select %p39, %s38, 0
      %p41 = scmp.lt.s32.totalorder %s25, %s40
      %s42 = scalar_select %p41, %s25, %s40
      %s43 = sld [smem:[#allocation5 + %s36]]
      %s44 = ssub.s32 %s43, 1
      %p45 = scmp.gt.s32.totalorder %s44, 0
      %s46 = scalar_select %p45, %s44, 0
      %p47 = scmp.lt.s32.totalorder %s32, %s46
      %s48 = scalar_select %p47, %s32, %s46
      %s49 = ssub.s32 %s24, %s36
      %s50 = ssub.s32 %s42, %s48
      %s51 = sor.u32 %s49, %s50
      %p52 = scmp.eq.s32.totalorder %s51, 0
      %s54 = sadd.s32 %s53, 1
      %s55 = scalar_select %p52, %s53, %s54
      %p58 = pneg %p52
      %p59 = scmp.eq.s32.totalorder %s17, 1
      %p60 = por %p58, %p59
      %p61 = scmp.ne.s32.totalorder %s53, %s56
      %p62 = scmp.eq.s32.totalorder %s17, 0
      %p63 = por %p61, %p62
      %p64 = scmp.ne.s32.totalorder %s53, %s56
      %p65 = scmp.eq.s32.totalorder %s22, 1
      %p66 = por %p64, %p65
      %p67 = scmp.ne.s32.totalorder %s56, %s57
      %p68 = scmp.eq.s32.totalorder %s22, 0
      %p69 = por %p67, %p68
      %p70 = scmp.ne.s32.totalorder %s56, %s57
      %p71 = scmp.eq.s32.totalorder %s23, 1
      %p72 = por %p70, %p71
      %p74 = scmp.ne.s32.totalorder %s57, %s73
      %p75 = scmp.eq.s32.totalorder %s23, 0
      %p76 = por %p74, %p75
      %s77 = sld [smem:[#allocation5 + %s24]]
      %s78 = ssub.s32 %s77, 1
      %p79 = scmp.gt.s32.totalorder %s78, 0
      %s80 = scalar_select %p79, %s78, 0
      %p81 = scmp.lt.s32.totalorder %s25, %s80
      %s82 = scalar_select %p81, %s25, %s80
      %s83 = sld [smem:[#allocation5 + %s36]]
      %s84 = ssub.s32 %s83, 1
      %p85 = scmp.gt.s32.totalorder %s84, 0
      %s86 = scalar_select %p85, %s84, 0
      %p87 = scmp.lt.s32.totalorder %s32, %s86
      %s88 = scalar_select %p87, %s32, %s86
      %s89 = ssub.s32 %s24, %s36
      %s90 = ssub.s32 %s82, %s88
      %s91 = sor.u32 %s89, %s90
      %p92 = scmp.eq.s32.totalorder %s91, 0
      %s94 = sadd.s32 %s93, 1
      %s95 = scalar_select %p92, %s93, %s94
      %p98 = pneg %p92
      %p99 = scmp.eq.s32.totalorder %s17, 1
      %p100 = por %p98, %p99
      %p101 = scmp.ne.s32.totalorder %s93, %s96
      %p102 = scmp.eq.s32.totalorder %s17, 0
      %p103 = por %p101, %p102
      %p104 = scmp.ne.s32.totalorder %s93, %s96
      %p105 = scmp.eq.s32.totalorder %s22, 1
      %p106 = por %p104, %p105
      %p107 = scmp.ne.s32.totalorder %s96, %s97
      %p108 = scmp.eq.s32.totalorder %s22, 0
      %p109 = por %p107, %p108
      %p110 = scmp.ne.s32.totalorder %s96, %s97
      %p111 = scmp.eq.s32.totalorder %s23, 1
      %p112 = por %p110, %p111
      %p114 = scmp.ne.s32.totalorder %s97, %s113
      %p115 = scmp.eq.s32.totalorder %s23, 0
      %p116 = por %p114, %p115
      %s117 = ssub.s32 %s24, %s36
      %p118 = scmp.eq.s32.totalorder %s117, 0
      %s120 = sadd.s32 %s119, 1
      %s121 = scalar_select %p118, %s119, %s120
      %p124 = pneg %p118
      %p125 = scmp.eq.s32.totalorder %s17, 1
      %p126 = por %p124, %p125
      %p127 = scmp.ne.s32.totalorder %s119, %s122
      %p128 = scmp.eq.s32.totalorder %s17, 0
      %p129 = por %p127, %p128
      %p130 = scmp.ne.s32.totalorder %s119, %s122
      %p131 = scmp.eq.s32.totalorder %s22, 1
      %p132 = por %p130, %p131
      %p133 = scmp.ne.s32.totalorder %s122, %s123
      %p134 = scmp.eq.s32.totalorder %s22, 0
      %p135 = por %p133, %p134
      %p136 = scmp.ne.s32.totalorder %s122, %s123
      %p137 = scmp.eq.s32.totalorder %s23, 1
      %p138 = por %p136, %p137
      %p140 = scmp.ne.s32.totalorder %s123, %s139
      %p141 = scmp.eq.s32.totalorder %s23, 0
      %p142 = por %p140, %p141
      %p143 = scmp.le.s32.totalorder 1, %s17
      %p144 = scmp.lt.s32.totalorder %s17, 3
      %p145 = pnand %p143, %p144
      %p146 = pneg %p145
      // Predicated region
      $region9: #{tpu_custom_call.1} parent=5 // pred_check
        _
      $region10: #{tpu_custom_call.1} parent=5 // pred_check_branch
        %148 = sbr.rel (%p145) target = $region12
      $region11: #{tpu_custom_call.1} parent=5 // pred_region
        %s149 = ssub.s32 %s17, 1
      $region12: #{tpu_custom_call.1} parent=5 // pred_fallthru
        _
      %p150 = scmp.lt.s32.totalorder %s17, 2
      // Predicated region
      $region13: #{tpu_custom_call.1} parent=5 // pred_check
        %p151 = pneg %p150
      $region14: #{tpu_custom_call.1} parent=5 // pred_check_branch
        %153 = sbr.rel (%p151) target = $region16
      $region15: #{tpu_custom_call.1} parent=5 // pred_region
        // Predicated region
        $region17: #{tpu_custom_call.1} parent=15 // pred_check
          %p154 = pneg %p63
        $region18: #{tpu_custom_call.1} parent=15 // pred_check_branch
          %156 = sbr.rel (%p154) target = $region20
        $region19: #{tpu_custom_call.1} parent=15 // pred_region
          #allocation13 [shape = 'u32[6]{0}', space=smem, size = 0x18, scoped, tag = 'DMA stride descriptor']
          %s157 = sand.u32 %s53, 1
          %s158 = scalar_lea.sflag [#allocation7], %s157
          %s159 = sand.u32 %s53, 1
          %s160 = smul.addr %s159, 512
          %s161 = scalar_lea.vmem [#allocation6], %s160
          %s162 = sld [smem:[#allocation5 + %s24]]
          %s163 = ssub.s32 %s162, 1
          %p164 = scmp.gt.s32.totalorder %s163, 0
          %s165 = scalar_select %p164, %s163, 0
          %p166 = scmp.lt.s32.totalorder %s25, %s165
          %s167 = scalar_select %p166, %s25, %s165
          %s168 = smul.u32 4, %s24
          %s169 = smul.u32 16, %s167
          %s171 = ssub.s32 8192, 8192
          %172 = vsyncadd %s158, %s171
          %s173 = smul.addr %s168, 32
          %s174 = sadd.s32 %s169, %s173
          %s175 = smul.addr %s174, 128
          %s176 = scalar_lea.hbm %s1, %s175
          %s178 = sshll.u32 1, 14
          %s179 = sxor.u32 4294967295, %s178
          %s181 = sld [smem:[#allocation0]]
          %s182 = sadd.s32 2, %s181
          %s184 = sshll.u32 7, 26
          %s185 = sxor.u32 4294967295, %s184
          %s186 = sand.u32 0, %s185
          %s187 = sshll.u32 %s182, 26
          %s188 = sor.u32 %s186, %s187
          %s189 = sshll.u32 %s161, 4
          %s190 = int_to_ptr.vmem [resolvable:$true] %s189
          %196 = sst [smem:[#allocation13]] 4096
          %s197 = scalar_lea.smem [#allocation13], 1
          %198 = sst [smem:[%s197]] 2048
          %s199 = scalar_lea.smem [#allocation13], 2
          %200 = sst [smem:[%s199]] 16
          %s201 = scalar_lea.smem [#allocation13], 3
          %202 = sst [smem:[%s201]] 128
          %s203 = scalar_lea.smem [#allocation13], 4
          %204 = sst [smem:[%s203]] 128
          %s205 = scalar_lea.smem [#allocation13], 5
          %206 = sst [smem:[%s205]] 8
          %208 = dma.general %s176, 8192, %s190, %s158, 131072, [#allocation13], %s188, 0
        $region20: #{tpu_custom_call.1} parent=15 // pred_fallthru
          _
        // Predicated region
        $region21: #{tpu_custom_call.1} parent=15 // pred_check
          %p209 = pneg %p103
        $region22: #{tpu_custom_call.1} parent=15 // pred_check_branch
          %211 = sbr.rel (%p209) target = $region24
        $region23: #{tpu_custom_call.1} parent=15 // pred_region
          %s212 = sand.u32 %s93, 1
          %s213 = scalar_lea.sflag [#allocation10], %s212
          %s214 = sand.u32 %s93, 1
          %s215 = smul.addr %s214, 4
          %s216 = scalar_lea.vmem [#allocation9], %s215
          %s217 = sld [smem:[#allocation5 + %s24]]
          %s218 = ssub.s32 %s217, 1
          %p219 = scmp.gt.s32.totalorder %s218, 0
          %s220 = scalar_select %p219, %s218, 0
          %p221 = scmp.lt.s32.totalorder %s25, %s220
          %s222 = scalar_select %p221, %s25, %s220
          %s224 = ssub.s32 64, 64
          %225 = vsyncadd %s213, %s224
          %s226 = smul.addr %s24, 2
          %s227 = sadd.s32 %s222, %s226
          %s228 = smul.addr %s227, 64
          %s229 = scalar_lea.hbm %s2, %s228
          %s231 = sshll.u32 %s216, 4
          %s232 = int_to_ptr.vmem [resolvable:$true] %s231
          %234 = dma.hbm_to_vmem [thread:$0]  %s229, 64, %s232, %s213
        $region24: #{tpu_custom_call.1} parent=15 // pred_fallthru
          _
      $region16: #{tpu_custom_call.1} parent=5 // pred_fallthru
        _
      %p235 = scmp.le.s32.totalorder 1, %s17
      %p236 = scmp.lt.s32.totalorder %s17, 3
      %p237 = pnand %p235, %p236
      %p238 = pneg %p237
      // Predicated region
      $region25: #{tpu_custom_call.1} parent=5 // pred_check
        _
      $region26: #{tpu_custom_call.1} parent=5 // pred_check_branch
        %240 = sbr.rel (%p237) target = $region28
      $region27: #{tpu_custom_call.1} parent=5 // pred_region
        %s241 = ssub.s32 %s17, 1
        %s242 = sand.u32 %s56, 1
        %s243 = scalar_lea.sflag [#allocation7], %s242
        %s244 = sand.u32 %s56, 1
        %s245 = smul.addr %s244, 512
        %s246 = scalar_lea.vmem [#allocation6], %s245
        // Predicated region
        $region29: #{tpu_custom_call.1} parent=27 // pred_check
          %p247 = pneg %p69
        $region30: #{tpu_custom_call.1} parent=27 // pred_check_branch
          %249 = sbr.rel (%p247) target = $region32
        $region31: #{tpu_custom_call.1} parent=27 // pred_region
          %250 = dma.done %s243, 8192
        $region32: #{tpu_custom_call.1} parent=27 // pred_fallthru
          _
        %s251 = sand.u32 %s96, 1
        %s252 = scalar_lea.sflag [#allocation10], %s251
        %s253 = sand.u32 %s96, 1
        %s254 = smul.addr %s253, 4
        %s255 = scalar_lea.vmem [#allocation9], %s254
        // Predicated region
        $region33: #{tpu_custom_call.1} parent=27 // pred_check
          %p256 = pneg %p109
        $region34: #{tpu_custom_call.1} parent=27 // pred_check_branch
          %258 = sbr.rel (%p256) target = $region36
        $region35: #{tpu_custom_call.1} parent=27 // pred_region
          %259 = dma.done %s252, 64
        $region36: #{tpu_custom_call.1} parent=27 // pred_fallthru
          _
        %s260 = sand.u32 %s56, 1
        %s261 = scalar_lea.sflag [#allocation7], %s260
        %s262 = sand.u32 %s56, 1
        %s263 = smul.addr %s262, 512
        %s264 = scalar_lea.vmem [#allocation6], %s263
        %p265 = pneg %p69
        %p266 = pneg %p66
        %s267 = sand.u32 %s96, 1
        %s268 = scalar_lea.sflag [#allocation10], %s267
        %s269 = sand.u32 %s96, 1
        %s270 = smul.addr %s269, 4
        %s271 = scalar_lea.vmem [#allocation9], %s270
        %p272 = pneg %p109
        %p273 = pneg %p106
        %p274 = pneg %p135
        %p275 = pneg %p132
        %s276 = sld [smem:[#allocation5 + %s26]]
        %s277 = ssub.s32 %s276, 1
        %p278 = scmp.gt.s32.totalorder %s277, 0
        %s279 = scalar_select %p278, %s277, 0
        %p280 = scmp.lt.s32.totalorder %s27, %s279
        %s281 = scalar_select %p280, %s27, %s279
        %s282 = smul.u32 4, %s26
        %s283 = smul.u32 16, %s281
        %s284 = sld [smem:[#allocation5 + %s26]]
        %s285 = ssub.s32 %s284, 1
        %p286 = scmp.gt.s32.totalorder %s285, 0
        %s287 = scalar_select %p286, %s285, 0
        %p288 = scmp.lt.s32.totalorder %s27, %s287
        %s289 = scalar_select %p288, %s27, %s287
        %p290 = scmp.eq.s32.totalorder %s27, 0
        // Predicated region
        $region37: #{tpu_custom_call.1} parent=27 // pred_check
          %p291 = pneg %p290
        $region38: #{tpu_custom_call.1} parent=27 // pred_check_branch
          %293 = sbr.rel (%p291) target = $region40
        $region39: #{tpu_custom_call.1} parent=27 // pred_region
          %294 = vst [vmem:[#allocation2] sm:$0xf] 0.0
          %vm295 = vcmask 3072
          %296 = vst.msk [vmem:[#allocation3] sm:$0xf] %vm295, 0.0
        $region40: #{tpu_custom_call.1} parent=27 // pred_fallthru
          _
        %s297 = sld [smem:[#allocation5 + %s26]]
        %p298 = scmp.lt.s32.totalorder %s27, %s297
        // Predicated region
        $region41: #{tpu_custom_call.1} parent=27 // pred_check
          %p299 = pneg %p298
        $region42: #{tpu_custom_call.1} parent=27 // pred_check_branch
          %301 = sbr.rel (%p299) target = $region44
        $region43: #{tpu_custom_call.1} parent=27 // pred_region
          %v302 = vld [vmem:[%s255] sm:$0xf]
          %v303 = vcvt.s32.f32 %v302
          %v304 = vld [vmem:[%s246] sm:$0xff]
          %v305 = vld [vmem:[%s246 + $0x8] sm:$0xff]
          %v306 = vld [vmem:[%s246 + $0x10] sm:$0xff]
          %v307 = vld [vmem:[%s246 + $0x18] sm:$0xff]
          %v308 = vld [vmem:[%s246 + $0x20] sm:$0xff]
          %v309 = vld [vmem:[%s246 + $0x28] sm:$0xff]
          %v310 = vld [vmem:[%s246 + $0x30] sm:$0xff]
          %v311 = vld [vmem:[%s246 + $0x38] sm:$0xff]
          %v312 = vld [vmem:[%s246 + $0x40] sm:$0xff]
          %v313 = vld [vmem:[%s246 + $0x48] sm:$0xff]
          %v314 = vld [vmem:[%s246 + $0x50] sm:$0xff]
          %v315 = vld [vmem:[%s246 + $0x58] sm:$0xff]
          %v316 = vld [vmem:[%s246 + $0x60] sm:$0xff]
          %v317 = vld [vmem:[%s246 + $0x68] sm:$0xff]
          %v318 = vld [vmem:[%s246 + $0x70] sm:$0xff]
          %v319 = vld [vmem:[%s246 + $0x78] sm:$0xff]
          %v320 = vld [vmem:[%s246 + $0x80] sm:$0xff]
          %v321 = vld [vmem:[%s246 + $0x88] sm:$0xff]
          %v322 = vld [vmem:[%s246 + $0x90] sm:$0xff]
          %v323 = vld [vmem:[%s246 + $0x98] sm:$0xff]
          %v324 = vld [vmem:[%s246 + $0xa0] sm:$0xff]
          %v325 = vld [vmem:[%s246 + $0xa8] sm:$0xff]
          %v326 = vld [vmem:[%s246 + $0xb0] sm:$0xff]
          %v327 = vld [vmem:[%s246 + $0xb8] sm:$0xff]
          %v328 = vld [vmem:[%s246 + $0xc0] sm:$0xff]
          %v329 = vld [vmem:[%s246 + $0xc8] sm:$0xff]
          %v330 = vld [vmem:[%s246 + $0xd0] sm:$0xff]
          %v331 = vld [vmem:[%s246 + $0xd8] sm:$0xff]
          %v332 = vld [vmem:[%s246 + $0xe0] sm:$0xff]
          %v333 = vld [vmem:[%s246 + $0xe8] sm:$0xff]
          %v334 = vld [vmem:[%s246 + $0xf0] sm:$0xff]
          %v335 = vld [vmem:[%s246 + $0xf8] sm:$0xff]
          %v336 = vld [vmem:[%s246 + $0x100] sm:$0xff]
          %v337 = vld [vmem:[%s246 + $0x108] sm:$0xff]
          %v338 = vld [vmem:[%s246 + $0x110] sm:$0xff]
          %v339 = vld [vmem:[%s246 + $0x118] sm:$0xff]
          %v340 = vld [vmem:[%s246 + $0x120] sm:$0xff]
          %v341 = vld [vmem:[%s246 + $0x128] sm:$0xff]
          %v342 = vld [vmem:[%s246 + $0x130] sm:$0xff]
          %v343 = vld [vmem:[%s246 + $0x138] sm:$0xff]
          %v344 = vld [vmem:[%s246 + $0x140] sm:$0xff]
          %v345 = vld [vmem:[%s246 + $0x148] sm:$0xff]
          %v346 = vld [vmem:[%s246 + $0x150] sm:$0xff]
          %v347 = vld [vmem:[%s246 + $0x158] sm:$0xff]
          %v348 = vld [vmem:[%s246 + $0x160] sm:$0xff]
          %v349 = vld [vmem:[%s246 + $0x168] sm:$0xff]
          %v350 = vld [vmem:[%s246 + $0x170] sm:$0xff]
          %v351 = vld [vmem:[%s246 + $0x178] sm:$0xff]
          %v352 = vld [vmem:[%s246 + $0x180] sm:$0xff]
          %v353 = vld [vmem:[%s246 + $0x188] sm:$0xff]
          %v354 = vld [vmem:[%s246 + $0x190] sm:$0xff]
          %v355 = vld [vmem:[%s246 + $0x198] sm:$0xff]
          %v356 = vld [vmem:[%s246 + $0x1a0] sm:$0xff]
          %v357 = vld [vmem:[%s246 + $0x1a8] sm:$0xff]
          %v358 = vld [vmem:[%s246 + $0x1b0] sm:$0xff]
          %v359 = vld [vmem:[%s246 + $0x1b8] sm:$0xff]
          %v360 = vld [vmem:[%s246 + $0x1c0] sm:$0xff]
          %v361 = vld [vmem:[%s246 + $0x1c8] sm:$0xff]
          %v362 = vld [vmem:[%s246 + $0x1d0] sm:$0xff]
          %v363 = vld [vmem:[%s246 + $0x1d8] sm:$0xff]
          %v364 = vld [vmem:[%s246 + $0x1e0] sm:$0xff]
          %v365 = vld [vmem:[%s246 + $0x1e8] sm:$0xff]
          %v366 = vld [vmem:[%s246 + $0x1f0] sm:$0xff]
          %v367 = vld [vmem:[%s246 + $0x1f8] sm:$0xff]
          %v368 = vld [vmem:[#allocation2] sm:$0xf]
          %v369 = vlaneseq
          %v370 = vshrl.u32 %v369, 7
          %v371 = vsub.s32 0, %v370
          %v372 = vrot.slane %v303, %v371
          %374 = vbcast.lane.b32.xlu0 %v372, 256
          %v375 = vpop.permute.xlu0 %374
          %s377 = sor.u32 256, 8
          %378 = vbcast.lane.b32.xlu0 %v372, %s377
          %v379 = vpop.permute.xlu0 %378
          %s381 = sor.u32 256, 16
          %382 = vbcast.lane.b32.xlu0 %v372, %s381
          %v383 = vpop.permute.xlu0 %382
          %s385 = sor.u32 256, 24
          %386 = vbcast.lane.b32.xlu0 %v372, %s385
          %v387 = vpop.permute.xlu0 %386
          %s389 = sor.u32 256, 32
          %390 = vbcast.lane.b32.xlu0 %v372, %s389
          %v391 = vpop.permute.xlu0 %390
          %s393 = sor.u32 256, 40
          %394 = vbcast.lane.b32.xlu0 %v372, %s393
          %v395 = vpop.permute.xlu0 %394
          %s397 = sor.u32 256, 48
          %398 = vbcast.lane.b32.xlu0 %v372, %s397
          %v399 = vpop.permute.xlu0 %398
          %s401 = sor.u32 256, 56
          %402 = vbcast.lane.b32.xlu0 %v372, %s401
          %v403 = vpop.permute.xlu0 %402
          %s405 = sor.u32 256, 64
          %406 = vbcast.lane.b32.xlu0 %v372, %s405
          %v407 = vpop.permute.xlu0 %406
          %s409 = sor.u32 256, 72
          %410 = vbcast.lane.b32.xlu0 %v372, %s409
          %v411 = vpop.permute.xlu0 %410
          %s413 = sor.u32 256, 80
          %414 = vbcast.lane.b32.xlu0 %v372, %s413
          %v415 = vpop.permute.xlu0 %414
          %s417 = sor.u32 256, 88
          %418 = vbcast.lane.b32.xlu0 %v372, %s417
          %v419 = vpop.permute.xlu0 %418
          %s421 = sor.u32 256, 96
          %422 = vbcast.lane.b32.xlu0 %v372, %s421
          %v423 = vpop.permute.xlu0 %422
          %s425 = sor.u32 256, 104
          %426 = vbcast.lane.b32.xlu0 %v372, %s425
          %v427 = vpop.permute.xlu0 %426
          %s429 = sor.u32 256, 112
          %430 = vbcast.lane.b32.xlu0 %v372, %s429
          %v431 = vpop.permute.xlu0 %430
          %s433 = sor.u32 256, 120
          %434 = vbcast.lane.b32.xlu0 %v372, %s433
          %v435 = vpop.permute.xlu0 %434
          %v436 = vlaneseq
          %v437 = vshrl.u32 %v436, 7
          %v438 = vsub.s32 1, %v437
          %v439 = vrot.slane %v303, %v438
          %441 = vbcast.lane.b32.xlu0 %v439, 256
          %v442 = vpop.permute.xlu0 %441
          %s444 = sor.u32 256, 8
          %445 = vbcast.lane.b32.xlu0 %v439, %s444
          %v446 = vpop.permute.xlu0 %445
          %s448 = sor.u32 256, 16
          %449 = vbcast.lane.b32.xlu0 %v439, %s448
          %v450 = vpop.permute.xlu0 %449
          %s452 = sor.u32 256, 24
          %453 = vbcast.lane.b32.xlu0 %v439, %s452
          %v454 = vpop.permute.xlu0 %453
          %s456 = sor.u32 256, 32
          %457 = vbcast.lane.b32.xlu0 %v439, %s456
          %v458 = vpop.permute.xlu0 %457
          %s460 = sor.u32 256, 40
          %461 = vbcast.lane.b32.xlu0 %v439, %s460
          %v462 = vpop.permute.xlu0 %461
          %s464 = sor.u32 256, 48
          %465 = vbcast.lane.b32.xlu0 %v439, %s464
          %v466 = vpop.permute.xlu0 %465
          %s468 = sor.u32 256, 56
          %469 = vbcast.lane.b32.xlu0 %v439, %s468
          %v470 = vpop.permute.xlu0 %469
          %s472 = sor.u32 256, 64
          %473 = vbcast.lane.b32.xlu0 %v439, %s472
          %v474 = vpop.permute.xlu0 %473
          %s476 = sor.u32 256, 72
          %477 = vbcast.lane.b32.xlu0 %v439, %s476
          %v478 = vpop.permute.xlu0 %477
          %s480 = sor.u32 256, 80
          %481 = vbcast.lane.b32.xlu0 %v439, %s480
          %v482 = vpop.permute.xlu0 %481
          %s484 = sor.u32 256, 88
          %485 = vbcast.lane.b32.xlu0 %v439, %s484
          %v486 = vpop.permute.xlu0 %485
          %s488 = sor.u32 256, 96
          %489 = vbcast.lane.b32.xlu0 %v439, %s488
          %v490 = vpop.permute.xlu0 %489
          %s492 = sor.u32 256, 104
          %493 = vbcast.lane.b32.xlu0 %v439, %s492
          %v494 = vpop.permute.xlu0 %493
          %s496 = sor.u32 256, 112
          %497 = vbcast.lane.b32.xlu0 %v439, %s496
          %v498 = vpop.permute.xlu0 %497
          %s500 = sor.u32 256, 120
          %501 = vbcast.lane.b32.xlu0 %v439, %s500
          %v502 = vpop.permute.xlu0 %501
          %v503 = vlaneseq
          %v504 = vshrl.u32 %v503, 7
          %v505 = vsub.s32 2, %v504
          %v506 = vrot.slane %v303, %v505
          %508 = vbcast.lane.b32.xlu0 %v506, 256
          %v509 = vpop.permute.xlu0 %508
          %s511 = sor.u32 256, 8
          %512 = vbcast.lane.b32.xlu0 %v506, %s511
          %v513 = vpop.permute.xlu0 %512
          %s515 = sor.u32 256, 16
          %516 = vbcast.lane.b32.xlu0 %v506, %s515
          %v517 = vpop.permute.xlu0 %516
          %s519 = sor.u32 256, 24
          %520 = vbcast.lane.b32.xlu0 %v506, %s519
          %v521 = vpop.permute.xlu0 %520
          %s523 = sor.u32 256, 32
          %524 = vbcast.lane.b32.xlu0 %v506, %s523
          %v525 = vpop.permute.xlu0 %524
          %s527 = sor.u32 256, 40
          %528 = vbcast.lane.b32.xlu0 %v506, %s527
          %v529 = vpop.permute.xlu0 %528
          %s531 = sor.u32 256, 48
          %532 = vbcast.lane.b32.xlu0 %v506, %s531
          %v533 = vpop.permute.xlu0 %532
          %s535 = sor.u32 256, 56
          %536 = vbcast.lane.b32.xlu0 %v506, %s535
          %v537 = vpop.permute.xlu0 %536
          %s539 = sor.u32 256, 64
          %540 = vbcast.lane.b32.xlu0 %v506, %s539
          %v541 = vpop.permute.xlu0 %540
          %s543 = sor.u32 256, 72
          %544 = vbcast.lane.b32.xlu0 %v506, %s543
          %v545 = vpop.permute.xlu0 %544
          %s547 = sor.u32 256, 80
          %548 = vbcast.lane.b32.xlu0 %v506, %s547
          %v549 = vpop.permute.xlu0 %548
          %s551 = sor.u32 256, 88
          %552 = vbcast.lane.b32.xlu0 %v506, %s551
          %v553 = vpop.permute.xlu0 %552
          %s555 = sor.u32 256, 96
          %556 = vbcast.lane.b32.xlu0 %v506, %s555
          %v557 = vpop.permute.xlu0 %556
          %s559 = sor.u32 256, 104
          %560 = vbcast.lane.b32.xlu0 %v506, %s559
          %v561 = vpop.permute.xlu0 %560
          %s563 = sor.u32 256, 112
          %564 = vbcast.lane.b32.xlu0 %v506, %s563
          %v565 = vpop.permute.xlu0 %564
          %s567 = sor.u32 256, 120
          %568 = vbcast.lane.b32.xlu0 %v506, %s567
          %v569 = vpop.permute.xlu0 %568
          %v570 = vlaneseq
          %v571 = vshrl.u32 %v570, 7
          %v572 = vsub.s32 3, %v571
          %v573 = vrot.slane %v303, %v572
          %575 = vbcast.lane.b32.xlu0 %v573, 256
          %v576 = vpop.permute.xlu0 %575
          %s578 = sor.u32 256, 8
          %579 = vbcast.lane.b32.xlu0 %v573, %s578
          %v580 = vpop.permute.xlu0 %579
          %s582 = sor.u32 256, 16
          %583 = vbcast.lane.b32.xlu0 %v573, %s582
          %v584 = vpop.permute.xlu0 %583
          %s586 = sor.u32 256, 24
          %587 = vbcast.lane.b32.xlu0 %v573, %s586
          %v588 = vpop.permute.xlu0 %587
          %s590 = sor.u32 256, 32
          %591 = vbcast.lane.b32.xlu0 %v573, %s590
          %v592 = vpop.permute.xlu0 %591
          %s594 = sor.u32 256, 40
          %595 = vbcast.lane.b32.xlu0 %v573, %s594
          %v596 = vpop.permute.xlu0 %595
          %s598 = sor.u32 256, 48
          %599 = vbcast.lane.b32.xlu0 %v573, %s598
          %v600 = vpop.permute.xlu0 %599
          %s602 = sor.u32 256, 56
          %603 = vbcast.lane.b32.xlu0 %v573, %s602
          %v604 = vpop.permute.xlu0 %603
          %s606 = sor.u32 256, 64
          %607 = vbcast.lane.b32.xlu0 %v573, %s606
          %v608 = vpop.permute.xlu0 %607
          %s610 = sor.u32 256, 72
          %611 = vbcast.lane.b32.xlu0 %v573, %s610
          %v612 = vpop.permute.xlu0 %611
          %s614 = sor.u32 256, 80
          %615 = vbcast.lane.b32.xlu0 %v573, %s614
          %v616 = vpop.permute.xlu0 %615
          %s618 = sor.u32 256, 88
          %619 = vbcast.lane.b32.xlu0 %v573, %s618
          %v620 = vpop.permute.xlu0 %619
          %s622 = sor.u32 256, 96
          %623 = vbcast.lane.b32.xlu0 %v573, %s622
          %v624 = vpop.permute.xlu0 %623
          %s626 = sor.u32 256, 104
          %627 = vbcast.lane.b32.xlu0 %v573, %s626
          %v628 = vpop.permute.xlu0 %627
          %s630 = sor.u32 256, 112
          %631 = vbcast.lane.b32.xlu0 %v573, %s630
          %v632 = vpop.permute.xlu0 %631
          %s634 = sor.u32 256, 120
          %635 = vbcast.lane.b32.xlu0 %v573, %s634
          %v636 = vpop.permute.xlu0 %635
          %v637 = vmul.f32 %v304, %v375
          %v638 = vmul.f32 %v305, %v379
          %v639 = vmul.f32 %v306, %v383
          %v640 = vmul.f32 %v307, %v387
          %v641 = vmul.f32 %v308, %v391
          %v642 = vmul.f32 %v309, %v395
          %v643 = vmul.f32 %v310, %v399
          %v644 = vmul.f32 %v311, %v403
          %v645 = vmul.f32 %v312, %v407
          %v646 = vmul.f32 %v313, %v411
          %v647 = vmul.f32 %v314, %v415
          %v648 = vmul.f32 %v315, %v419
          %v649 = vmul.f32 %v316, %v423
          %v650 = vmul.f32 %v317, %v427
          %v651 = vmul.f32 %v318, %v431
          %v652 = vmul.f32 %v319, %v435
          %v653 = vmul.f32 %v320, %v442
          %v654 = vmul.f32 %v321, %v446
          %v655 = vmul.f32 %v322, %v450
          %v656 = vmul.f32 %v323, %v454
          %v657 = vmul.f32 %v324, %v458
          %v658 = vmul.f32 %v325, %v462
          %v659 = vmul.f32 %v326, %v466
          %v660 = vmul.f32 %v327, %v470
          %v661 = vmul.f32 %v328, %v474
          %v662 = vmul.f32 %v329, %v478
          %v663 = vmul.f32 %v330, %v482
          %v664 = vmul.f32 %v331, %v486
          %v665 = vmul.f32 %v332, %v490
          %v666 = vmul.f32 %v333, %v494
          %v667 = vmul.f32 %v334, %v498
          %v668 = vmul.f32 %v335, %v502
          %v669 = vmul.f32 %v336, %v509
          %v670 = vmul.f32 %v337, %v513
          %v671 = vmul.f32 %v338, %v517
          %v672 = vmul.f32 %v339, %v521
          %v673 = vmul.f32 %v340, %v525
          %v674 = vmul.f32 %v341, %v529
          %v675 = vmul.f32 %v342, %v533
          %v676 = vmul.f32 %v343, %v537
          %v677 = vmul.f32 %v344, %v541
          %v678 = vmul.f32 %v345, %v545
          %v679 = vmul.f32 %v346, %v549
          %v680 = vmul.f32 %v347, %v553
          %v681 = vmul.f32 %v348, %v557
          %v682 = vmul.f32 %v349, %v561
          %v683 = vmul.f32 %v350, %v565
          %v684 = vmul.f32 %v351, %v569
          %v685 = vmul.f32 %v352, %v576
          %v686 = vmul.f32 %v353, %v580
          %v687 = vmul.f32 %v354, %v584
          %v688 = vmul.f32 %v355, %v588
          %v689 = vmul.f32 %v356, %v592
          %v690 = vmul.f32 %v357, %v596
          %v691 = vmul.f32 %v358, %v600
          %v692 = vmul.f32 %v359, %v604
          %v693 = vmul.f32 %v360, %v608
          %v694 = vmul.f32 %v361, %v612
          %v695 = vmul.f32 %v362, %v616
          %v696 = vmul.f32 %v363, %v620
          %v697 = vmul.f32 %v364, %v624
          %v698 = vmul.f32 %v365, %v628
          %v699 = vmul.f32 %v366, %v632
          %v700 = vmul.f32 %v367, %v636
          %v701 = vadd.f32 %v637, %v638
          %v702 = vadd.f32 %v701, %v639
          %v703 = vadd.f32 %v702, %v640
          %v704 = vadd.f32 %v703, %v641
          %v705 = vadd.f32 %v704, %v642
          %v706 = vadd.f32 %v705, %v643
          %v707 = vadd.f32 %v706, %v644
          %v708 = vadd.f32 %v707, %v645
          %v709 = vadd.f32 %v708, %v646
          %v710 = vadd.f32 %v709, %v647
          %v711 = vadd.f32 %v710, %v648
          %v712 = vadd.f32 %v711, %v649
          %v713 = vadd.f32 %v712, %v650
          %v714 = vadd.f32 %v713, %v651
          %v715 = vadd.f32 %v714, %v652
          %v716 = vrot.slane %v715, 4
          %v717 = vadd.f32 %v715, %v716
          %v718 = vrot.slane %v717, 2
          %v719 = vadd.f32 %v717, %v718
          %v720 = vrot.slane %v719, 1
          %v721 = vadd.f32 %v719, %v720
          %v722 = vadd.f32 %v653, %v654
          %v723 = vadd.f32 %v722, %v655
          %v724 = vadd.f32 %v723, %v656
          %v725 = vadd.f32 %v724, %v657
          %v726 = vadd.f32 %v725, %v658
          %v727 = vadd.f32 %v726, %v659
          %v728 = vadd.f32 %v727, %v660
          %v729 = vadd.f32 %v728, %v661
          %v730 = vadd.f32 %v729, %v662
          %v731 = vadd.f32 %v730, %v663
          %v732 = vadd.f32 %v731, %v664
          %v733 = vadd.f32 %v732, %v665
          %v734 = vadd.f32 %v733, %v666
          %v735 = vadd.f32 %v734, %v667
          %v736 = vadd.f32 %v735, %v668
          %v737 = vrot.slane %v736, 4
          %v738 = vadd.f32 %v736, %v737
          %v739 = vrot.slane %v738, 2
          %v740 = vadd.f32 %v738, %v739
          %v741 = vrot.slane %v740, 1
          %v742 = vadd.f32 %v740, %v741
          %v743 = vadd.f32 %v669, %v670
          %v744 = vadd.f32 %v743, %v671
          %v745 = vadd.f32 %v744, %v672
          %v746 = vadd.f32 %v745, %v673
          %v747 = vadd.f32 %v746, %v674
          %v748 = vadd.f32 %v747, %v675
          %v749 = vadd.f32 %v748, %v676
          %v750 = vadd.f32 %v749, %v677
          %v751 = vadd.f32 %v750, %v678
          %v752 = vadd.f32 %v751, %v679
          %v753 = vadd.f32 %v752, %v680
          %v754 = vadd.f32 %v753, %v681
          %v755 = vadd.f32 %v754, %v682
          %v756 = vadd.f32 %v755, %v683
          %v757 = vadd.f32 %v756, %v684
          %v758 = vrot.slane %v757, 4
          %v759 = vadd.f32 %v757, %v758
          %v760 = vrot.slane %v759, 2
          %v761 = vadd.f32 %v759, %v760
          %v762 = vrot.slane %v761, 1
          %v763 = vadd.f32 %v761, %v762
          %v764 = vadd.f32 %v685, %v686
          %v765 = vadd.f32 %v764, %v687
          %v766 = vadd.f32 %v765, %v688
          %v767 = vadd.f32 %v766, %v689
          %v768 = vadd.f32 %v767, %v690
          %v769 = vadd.f32 %v768, %v691
          %v770 = vadd.f32 %v769, %v692
          %v771 = vadd.f32 %v770, %v693
          %v772 = vadd.f32 %v771, %v694
          %v773 = vadd.f32 %v772, %v695
          %v774 = vadd.f32 %v773, %v696
          %v775 = vadd.f32 %v774, %v697
          %v776 = vadd.f32 %v775, %v698
          %v777 = vadd.f32 %v776, %v699
          %v778 = vadd.f32 %v777, %v700
          %v779 = vrot.slane %v778, 4
          %v780 = vadd.f32 %v778, %v779
          %v781 = vrot.slane %v780, 2
          %v782 = vadd.f32 %v780, %v781
          %v783 = vrot.slane %v782, 1
          %v784 = vadd.f32 %v782, %v783
          %vm789 = vcmask 1041409
          %v790 = vsel %vm789, %v742, %v721
          %vm791 = vcmask 1042434
          %v792 = vsel %vm791, %v763, %v790
          %vm793 = vcmask 1043459
          %v794 = vsel %vm793, %v784, %v792
          %v796 = vadd.f32 %v368, %v794
          %797 = vst [vmem:[#allocation2] sm:$0xf] %v796
          %v798 = vld [vmem:[#allocation3] sm:$0xf]
          %vm799 = vcmask 1043456
          %v800 = vsel %vm799, %v303, 0.0
          %801 = vadd.xlane.f32.xlu0 %v800
          %v802 = vpop.xlane.xlu0 %801
          %v803 = vadd.f32 %v798, %v802
          %vm804 = vcmask 3072
          %805 = vst.msk [vmem:[#allocation3] sm:$0xf] %vm804, %v803
        $region44: #{tpu_custom_call.1} parent=27 // pred_fallthru
          _
        %p806 = scmp.eq.s32.totalorder %s27, 1
        // Predicated region
        $region45: #{tpu_custom_call.1} parent=27 // pred_check
          %p807 = pneg %p806
        $region46: #{tpu_custom_call.1} parent=27 // pred_check_branch
          %809 = sbr.rel (%p807) target = $region48
        $region47: #{tpu_custom_call.1} parent=27 // pred_region
          %v810 = vld [vmem:[#allocation2] sm:$0xf]
          %v811 = vld [vmem:[#allocation3] sm:$0xf]
          %v812 = vmul.f32 %v810, %v810
          %vm813 = vcmask 1043456
          %v814 = vsel %vm813, %v812, 0.0
          %815 = vadd.xlane.f32.xlu0 %v814
          %v816 = vpop.xlane.xlu0 %815
          %v817 = vmul.f32 %v811, 1e-12
          %v818 = vmul.f32 %v817, %v817
          %v819 = vmax.f32 %v816, %v818
          %v820 = vrsqrt.pop %v819
          %822 = vset.pattern.permute.xlu0 0
          %823 = vperm.xlu0 %822, %v820
          %v824 = vpop.permute.xlu0 %823
          %v826 = vmul.f32 %v810, %v824
          %827 = vst [vmem:[#allocation11] sm:$0xf] %v826
        $region48: #{tpu_custom_call.1} parent=27 // pred_fallthru
          _
        // Predicated region
        $region49: #{tpu_custom_call.1} parent=27 // pred_check
          %p828 = pneg %p132
        $region50: #{tpu_custom_call.1} parent=27 // pred_check_branch
          %830 = sbr.rel (%p828) target = $region52
        $region51: #{tpu_custom_call.1} parent=27 // pred_region
          %s832 = ssub.s32 64, 64
          %833 = vsyncadd [#allocation8], %s832
          %s834 = smul.addr %s26, 64
          %s835 = scalar_lea.hbm %s3, %s834
          %s837 = sshll.u32 [#allocation11], 4
          %s838 = int_to_ptr.vmem [resolvable:$true] %s837
          %840 = dma.vmem_to_hbm [thread:$0]  %s838, 64, %s835, [#allocation8]
        $region52: #{tpu_custom_call.1} parent=27 // pred_fallthru
          _
        // Predicated region
        $region53: #{tpu_custom_call.1} parent=27 // pred_check
          %p841 = pneg %p132
        $region54: #{tpu_custom_call.1} parent=27 // pred_check_branch
          %843 = sbr.rel (%p841) target = $region56
        $region55: #{tpu_custom_call.1} parent=27 // pred_region
          %844 = dma.done [#allocation8], 64
        $region56: #{tpu_custom_call.1} parent=27 // pred_fallthru
          _
      $region28: #{tpu_custom_call.1} parent=5 // pred_fallthru
        _
      %p845 = scmp.le.s32.totalorder 2, %s17
      // Predicated region
      $region57: #{tpu_custom_call.1} parent=5 // pred_check
        %p846 = pneg %p845
      $region58: #{tpu_custom_call.1} parent=5 // pred_check_branch
        %848 = sbr.rel (%p846) target = $region60
      $region59: #{tpu_custom_call.1} parent=5 // pred_region
        %s849 = ssub.s32 %s17, 2
      $region60: #{tpu_custom_call.1} parent=5 // pred_fallthru
        _
    $region6: #{tpu_custom_call.1} parent=1 // loop_footer
      %s21 = sadd.s32 1, %s17
    $region7: #{tpu_custom_call.1} parent=1 // loop_footer_branch
      %16 = sbr.rel target = $region3
    $region8: #{tpu_custom_call.1} parent=1 // loop_exit
      _
    %850 = vsyncpa [#allocation7], 1
    %s851 = scalar_lea.sflag [#allocation7], 1
    %852 = vsyncpa %s851, 1
    %853 = vsyncpa [#allocation10], 1
    %s854 = scalar_lea.sflag [#allocation10], 1
    %855 = vsyncpa %s854, 1
    %856 = vsyncpa [#allocation8], 1
    %s857 = scalar_lea.sflag [#allocation8], 1
    %858 = vsyncpa %s857, 1

</llo_original>
